<compile_context>
chip_gen: v5e
topology: v5e:2x2
jax: 0.10.0
libtpu: 0.0.40
codegen_flags: <defaults>
</compile_context>

<pallas_src>
import jax
import jax.numpy as jnp
from jax import lax
from jax.experimental import pallas as pl
from jax.experimental.pallas import tpu as pltpu

# ---- static configuration (consistent with the module's __init__) ----
BATCH = 8
INPUT_DIM = 32
EXPERT_HIDDEN = (64, 32)   # expert_hidden_units
GATE_HIDDEN = 32           # gate_hidden_units = [32]
NUM_EXPERTS = 2
NUM_TASKS = 2
H1, H2 = EXPERT_HIDDEN

# Fused-layer widths
N1 = NUM_EXPERTS * H1 + NUM_TASKS * GATE_HIDDEN   # 192 (first-layer slab)
EXP_OUT = NUM_EXPERTS * H2                        # 64  (both expert outputs)
N2_USED = EXP_OUT + NUM_TASKS                     # 66  (used columns of 2nd layer)
N2 = 128                                          # padded, lane-aligned 2nd-layer slab
OUT_W = NUM_TASKS * H2                            # 64  (lane-dense output)


def _make_kernel(tb, sub):
    """Build a kernel that processes a (tb, D) batch tile in `sub`-row sub-chunks."""
    n_sub = tb // sub

    def kernel(x_ref, w1_ref, b1_ref, w2_ref, b2_ref, out_ref):
        w1 = w1_ref[...]                                        # (D, 192)  (f32 or bf16)
        b1 = b1_ref[...]                                        # (1, 192)  f32
        w2 = w2_ref[...]                                        # (192, 128)
        b2 = b2_ref[...]                                        # (1, 128)  f32

        def process(r0):
            x = x_ref[pl.ds(r0, sub), :]                        # (sub, D)

            # fused first layer: all experts + all gates, one MXU pass (f32 accumulate)
            h = jnp.dot(x, w1, preferred_element_type=jnp.float32) + b1
            h = jnp.maximum(h, 0.0)                             # (sub, 192) f32

            # fused block-diagonal second layer (padded to 128 lanes)
            y = jnp.dot(h.astype(w2.dtype), w2,
                        preferred_element_type=jnp.float32) + b2  # (sub, 128) f32

            e = jnp.maximum(y[:, :EXP_OUT], 0.0)                # (sub, 64) = [e0 | e1]
            e0 = e[:, :H2]                                      # (sub, 32)
            e1 = e[:, H2:EXP_OUT]                               # (sub, 32)

            # 2-expert softmax == sigmoid(l0 - l1); the diff was folded into W2.
            diff = y[:, EXP_OUT:EXP_OUT + NUM_TASKS]            # (sub, T)
            p0 = pl.reciprocal(1.0 + jnp.exp(-diff), approx=True)  # P(expert 0), EUP

            for t in range(NUM_TASKS):
                g = p0[:, t:t + 1]                              # (sub, 1)
                out_ref[pl.ds(r0, sub), t * H2:(t + 1) * H2] = (
                    g * e0 + (1.0 - g) * e1).astype(out_ref.dtype)

        if n_sub == 1:
            process(0)
        else:
            def body(c, carry):
                process(pl.multiple_of(c * sub, sub))
                return carry
            lax.fori_loop(0, n_sub, body, 0, unroll=True)

    return kernel


def pack_params(params, dtype=jnp.float32):
    """Host-side packing of the 8 raw parameter tensors into 4 fused slabs.

    Weights may be cast to bf16 (MXU still accumulates in f32); biases stay f32
    since they are added post-matmul in f32.
    """
    ew1, eb1, ew2, eb2, gw1, gb1, gw2, gb2 = params

    # ---- first layer: concat all output columns -> (D, 192), bias (1, 192) ----
    w1_cat = jnp.concatenate([ew1[0], ew1[1], gw1[0], gw1[1]], axis=1)
    b1_cat = jnp.concatenate([eb1[0], eb1[1], gb1[0], gb1[1]], axis=1)

    # ---- second layer: block-diagonal, padded to (192, 128), bias (1, 128) ----
    w2_blk = jnp.zeros((N1, N2), jnp.float32)
    w2_blk = w2_blk.at[0:H1, 0:H2].set(ew2[0])
    w2_blk = w2_blk.at[H1:2 * H1, H2:2 * H2].set(ew2[1])
    # Gate second layer folded to logit-difference columns (l0 - l1) per task,
    # placed in lanes 64..65 of the padded block.
    g_off = 2 * H1
    for t in range(NUM_TASKS):
        gdw = gw2[t][:, 0] - gw2[t][:, 1]                       # (GATE_HIDDEN,)
        w2_blk = w2_blk.at[g_off + t * GATE_HIDDEN:
                           g_off + (t + 1) * GATE_HIDDEN, EXP_OUT + t].set(gdw)

    b2_cat = jnp.zeros((1, N2), jnp.float32)
    b2_cat = b2_cat.at[:, 0:H2].set(eb2[0])
    b2_cat = b2_cat.at[:, H2:2 * H2].set(eb2[1])
    for t in range(NUM_TASKS):
        b2_cat = b2_cat.at[:, EXP_OUT + t].set(gb2[t][0, 0] - gb2[t][0, 1])

    return (w1_cat.astype(dtype), b1_cat.astype(jnp.float32),
            w2_blk.astype(dtype), b2_cat.astype(jnp.float32))


def _mmoe_dense(x, packed):
    """Packed-slab forward without Pallas (for tiny batches)."""
    w1, b1, w2, b2 = packed
    x = x.astype(w1.dtype)
    h = jnp.maximum(jnp.dot(x, w1, preferred_element_type=jnp.float32) + b1, 0.0)
    y = jnp.dot(h.astype(w2.dtype), w2, preferred_element_type=jnp.float32) + b2
    e = jnp.maximum(y[:, :EXP_OUT], 0.0)
    e0, e1 = e[:, :H2], e[:, H2:EXP_OUT]
    p0 = jax.nn.sigmoid(y[:, EXP_OUT:EXP_OUT + NUM_TASKS])
    return [p0[:, t:t + 1] * e0 + (1.0 - p0[:, t:t + 1]) * e1
            for t in range(NUM_TASKS)]


def mmoe_forward(x, packed, *, batch_tile=1024, use_pallas=None):
    w1, b1, w2, b2 = packed
    B = x.shape[0]

    if use_pallas is None:
        use_pallas = B > 128            # tiny batches: launch overhead dominates
    if not use_pallas:
        out_list = _mmoe_dense(x, packed)
        return out_list

    x = x.astype(w1.dtype)              # bf16 inputs if the slabs are bf16

    # Batch tile: big (amortizes ~0.35us per-step overhead); 256-row sub-chunks
    # inside the kernel keep the (sub, 192) intermediate out of heavy spills.
    tb = min(batch_tile, B)
    if tb > 256:
        tb -= tb % 256
        sub = 256
    else:
        sub = tb
    grid = (pl.cdiv(B, tb),)

    itemsize_in = jnp.dtype(w1.dtype).itemsize
    cost = pl.CostEstimate(
        flops=2 * B * (INPUT_DIM * N1 + N1 * N2),
        transcendentals=B * NUM_TASKS,
        bytes_accessed=(B * (INPUT_DIM * itemsize_in + OUT_W * 4)
                        + (INPUT_DIM * N1 + N1 * N2) * itemsize_in
                        + (N1 + N2) * 4),
    )

    out = pl.pallas_call(
        _make_kernel(tb, sub),
        out_shape=jax.ShapeDtypeStruct((B, OUT_W), jnp.float32),
        grid=grid,
        in_specs=[
            pl.BlockSpec((tb, INPUT_DIM), lambda i: (i, 0)),    # x, tiled over batch
            pl.BlockSpec((INPUT_DIM, N1), lambda i: (0, 0)),    # fused W1
            pl.BlockSpec((1, N1), lambda i: (0, 0)),            # fused b1 (f32)
            pl.BlockSpec((N1, N2), lambda i: (0, 0)),           # block-diag W2 (padded)
            pl.BlockSpec((1, N2), lambda i: (0, 0)),            # fused b2 (f32)
        ],
        out_specs=pl.BlockSpec((tb, OUT_W), lambda i: (i, 0)),  # lane-dense output
        compiler_params=pltpu.CompilerParams(
            dimension_semantics=("parallel",)),                  # megacore sharding
        cost_estimate=cost,
    )(x, w1, b1, w2, b2)

    # Split back into the per-task list, matching the torch module's return.
    return [out[:, t * H2:(t + 1) * H2] for t in range(NUM_TASKS)]


def init_params(key):
    ks = jax.random.split(key, 8)
    scale = 0.1
    ew1 = scale * jax.random.normal(ks[0], (NUM_EXPERTS, INPUT_DIM, H1), jnp.float32)
    eb1 = scale * jax.random.normal(ks[1], (NUM_EXPERTS, 1, H1), jnp.float32)
    ew2 = scale * jax.random.normal(ks[2], (NUM_EXPERTS, H1, H2), jnp.float32)
    eb2 = scale * jax.random.normal(ks[3], (NUM_EXPERTS, 1, H2), jnp.float32)
    gw1 = scale * jax.random.normal(ks[4], (NUM_TASKS, INPUT_DIM, GATE_HIDDEN), jnp.float32)
    gb1 = scale * jax.random.normal(ks[5], (NUM_TASKS, 1, GATE_HIDDEN), jnp.float32)
    gw2 = scale * jax.random.normal(ks[6], (NUM_TASKS, GATE_HIDDEN, NUM_EXPERTS), jnp.float32)
    gb2 = scale * jax.random.normal(ks[7], (NUM_TASKS, 1, NUM_EXPERTS), jnp.float32)
    return (ew1, eb1, ew2, eb2, gw1, gb1, gw2, gb2)


def mmoe_reference(x, params):
    """Pure-JAX reference mirroring the original (unfused) PyTorch forward."""
    (ew1, eb1, ew2, eb2, gw1, gb1, gw2, gb2) = params
    experts = []
    for e in range(NUM_EXPERTS):
        h = jax.nn.relu(x @ ew1[e] + eb1[e])
        experts.append(jax.nn.relu(h @ ew2[e] + eb2[e]))
    experts_output = jnp.stack(experts, axis=1)                 # (B, E, H2)
    outs = []
    for t in range(NUM_TASKS):
        gh = jax.nn.relu(x @ gw1[t] + gb1[t])
        logits = gh @ gw2[t] + gb2[t]
        gate = jax.nn.softmax(logits, axis=-1)                  # (B, E)
        outs.append(jnp.sum(gate[:, :, None] * experts_output, axis=1))
    return outs


if __name__ == "__main__":
    key = jax.random.PRNGKey(0)
    kx, kp, kx2 = jax.random.split(key, 3)
    params = init_params(kp)

    # ---- test 1: small batch (module-sized), f32, forced through Pallas ----
    x = jax.random.normal(kx, (BATCH, INPUT_DIM), jnp.float32)
    packed_f32 = pack_params(params, dtype=jnp.float32)
    outs = mmoe_forward(x, packed_f32, use_pallas=True)
    outs = [jax.block_until_ready(o) for o in outs]
    refs = mmoe_reference(x, params)
    for o, r in zip(outs, refs):
        assert o.shape == (BATCH, H2)
        assert jnp.allclose(o, r, atol=5e-3, rtol=5e-3), "f32 small-batch mismatch"

    # tiny-batch dense dispatch (non-Pallas path) stays consistent
    outs_d = mmoe_forward(x, packed_f32)          # B=8 <= 128 -> dense path
    for o, r in zip(outs_d, refs):
        assert jnp.allclose(o, r, atol=5e-3, rtol=5e-3), "dense fallback mismatch"

    # ---- test 2: larger batch, B not a multiple of the tile (padded last block),
    #              multi-step grid + in-kernel sub-chunk loop, f32 ----
    B2 = 1000
    x2 = jax.random.normal(kx2, (B2, INPUT_DIM), jnp.float32)
    outs2 = mmoe_forward(x2, packed_f32, batch_tile=512, use_pallas=True)
    outs2 = [jax.block_until_ready(o) for o in outs2]
    refs2 = mmoe_reference(x2, params)
    for o, r in zip(outs2, refs2):
        assert o.shape == (B2, H2)
        assert jnp.allclose(o, r, atol=5e-3, rtol=5e-3), "f32 large-batch mismatch"

    # ---- test 3: bf16 I/O slabs (f32 accumulation), looser tolerance ----
    packed_bf16 = pack_params(params, dtype=jnp.bfloat16)
    outs3 = mmoe_forward(x2, packed_bf16, batch_tile=512, use_pallas=True)
    outs3 = [jax.block_until_ready(o) for o in outs3]
    for o, r in zip(outs3, refs2):
        assert o.dtype == jnp.float32 and o.shape == (B2, H2)
        assert jnp.allclose(o, r, atol=5e-2, rtol=5e-2), "bf16 mismatch"

    print("KERNEL_OK")
</pallas_src>

<mosaic_0001>
module attributes {stable_mosaic.version = 11 : i64} {
  func.func @kernel(%arg0: i32, %arg1: memref<8x32xf32, #tpu.memory_space<vmem>>, %arg2: memref<32x192xf32, #tpu.memory_space<vmem>>, %arg3: memref<1x192xf32, #tpu.memory_space<vmem>>, %arg4: memref<192x128xf32, #tpu.memory_space<vmem>>, %arg5: memref<1x128xf32, #tpu.memory_space<vmem>>, %arg6: memref<8x64xf32, #tpu.memory_space<vmem>>) attributes {dimension_semantics = [#tpu.dimension_semantics<parallel>], iteration_bounds = array<i64: 1>, scalar_prefetch = 0 : i64, scratch_operands = 0 : i64, tpu.core_type = #tpu.core_type<tc>, window_params = [{transform_indices = @transform_0, window_bounds = array<i64: 8, 32>}, {pipeline_mode = #tpu.pipeline_mode<synchronous>, transform_indices = @transform_1, window_bounds = array<i64: 32, 192>}, {pipeline_mode = #tpu.pipeline_mode<synchronous>, transform_indices = @transform_2, window_bounds = array<i64: 1, 192>}, {pipeline_mode = #tpu.pipeline_mode<synchronous>, transform_indices = @transform_3, window_bounds = array<i64: 192, 128>}, {pipeline_mode = #tpu.pipeline_mode<synchronous>, transform_indices = @transform_4, window_bounds = array<i64: 1, 128>}, {transform_indices = @transform_5, window_bounds = array<i64: 8, 64>}]} {
    %c0 = arith.constant 0 : index
    %c0_0 = arith.constant 0 : index
    %0 = vector.load %arg2[%c0, %c0_0] : memref<32x192xf32, #tpu.memory_space<vmem>>, vector<32x192xf32>
    %c0_1 = arith.constant 0 : index
    %c0_2 = arith.constant 0 : index
    %1 = vector.load %arg3[%c0_1, %c0_2] : memref<1x192xf32, #tpu.memory_space<vmem>>, vector<1x192xf32>
    %c0_3 = arith.constant 0 : index
    %c0_4 = arith.constant 0 : index
    %2 = vector.load %arg4[%c0_3, %c0_4] : memref<192x128xf32, #tpu.memory_space<vmem>>, vector<192x128xf32>
    %c0_5 = arith.constant 0 : index
    %c0_6 = arith.constant 0 : index
    %3 = vector.load %arg5[%c0_5, %c0_6] : memref<1x128xf32, #tpu.memory_space<vmem>>, vector<1x128xf32>
    %c0_7 = arith.constant 0 : index
    %c0_8 = arith.constant 0 : index
    %4 = vector.load %arg1[%c0_7, %c0_8] : memref<8x32xf32, #tpu.memory_space<vmem>>, vector<8x32xf32>
    %cst = arith.constant dense<0.000000e+00> : vector<8x192xf32>
    %5 = tpu.matmul %4, %0, %cst {dimension_numbers = #tpu.dot_dimension_numbers<[1], [0], [0], [1], [0, 0, 1, 1], [], []>} : vector<8x32xf32>, vector<32x192xf32>, vector<8x192xf32> -> vector<8x192xf32>
    %6 = vector.broadcast %1 : vector<1x192xf32> to vector<8x192xf32>
    %7 = arith.addf %5, %6 : vector<8x192xf32>
    %cst_9 = arith.constant 0.000000e+00 : f32
    %8 = vector.broadcast %cst_9 : f32 to vector<8x192xf32>
    %9 = arith.maximumf %7, %8 : vector<8x192xf32>
    %cst_10 = arith.constant dense<0.000000e+00> : vector<8x128xf32>
    %10 = tpu.matmul %9, %2, %cst_10 {dimension_numbers = #tpu.dot_dimension_numbers<[1], [0], [0], [1], [0, 0, 1, 1], [], []>} : vector<8x192xf32>, vector<192x128xf32>, vector<8x128xf32> -> vector<8x128xf32>
    %11 = vector.broadcast %3 : vector<1x128xf32> to vector<8x128xf32>
    %12 = arith.addf %10, %11 : vector<8x128xf32>
    %13 = vector.extract_strided_slice %12 {offsets = [0, 0], sizes = [8, 64], strides = [1, 1]} : vector<8x128xf32> to vector<8x64xf32>
    %cst_11 = arith.constant 0.000000e+00 : f32
    %14 = vector.broadcast %cst_11 : f32 to vector<8x64xf32>
    %15 = arith.maximumf %13, %14 : vector<8x64xf32>
    %16 = vector.extract_strided_slice %15 {offsets = [0, 0], sizes = [8, 32], strides = [1, 1]} : vector<8x64xf32> to vector<8x32xf32>
    %17 = vector.extract_strided_slice %15 {offsets = [0, 32], sizes = [8, 32], strides = [1, 1]} : vector<8x64xf32> to vector<8x32xf32>
    %18 = vector.extract_strided_slice %12 {offsets = [0, 64], sizes = [8, 2], strides = [1, 1]} : vector<8x128xf32> to vector<8x2xf32>
    %cst_12 = arith.constant 0.000000e+00 : f32
    %19 = vector.broadcast %cst_12 : f32 to vector<8x2xf32>
    %20 = arith.subf %19, %18 : vector<8x2xf32>
    %21 = math.exp %20 : vector<8x2xf32>
    %cst_13 = arith.constant 1.000000e+00 : f32
    %22 = vector.broadcast %cst_13 : f32 to vector<8x2xf32>
    %23 = arith.addf %22, %21 : vector<8x2xf32>
    %24 = tpu.reciprocal %23 {approx = true} : vector<8x2xf32> -> vector<8x2xf32>
    %25 = vector.extract_strided_slice %24 {offsets = [0, 0], sizes = [8, 1], strides = [1, 1]} : vector<8x2xf32> to vector<8x1xf32>
    %26 = vector.broadcast %25 : vector<8x1xf32> to vector<8x32xf32>
    %27 = arith.mulf %26, %16 : vector<8x32xf32>
    %cst_14 = arith.constant 1.000000e+00 : f32
    %28 = vector.broadcast %cst_14 : f32 to vector<8x1xf32>
    %29 = arith.subf %28, %25 : vector<8x1xf32>
    %30 = vector.broadcast %29 : vector<8x1xf32> to vector<8x32xf32>
    %31 = arith.mulf %30, %17 : vector<8x32xf32>
    %32 = arith.addf %27, %31 : vector<8x32xf32>
    %c0_15 = arith.constant 0 : index
    %c0_16 = arith.constant 0 : index
    %33 = vector.load %arg6[%c0_15, %c0_16] : memref<8x64xf32, #tpu.memory_space<vmem>>, vector<8x32xf32>
    tpu.vector_store %arg6[%c0_15, %c0_16], %32 {strides = array<i32>} : memref<8x64xf32, #tpu.memory_space<vmem>>, vector<8x32xf32>,
    %34 = vector.extract_strided_slice %24 {offsets = [0, 1], sizes = [8, 1], strides = [1, 1]} : vector<8x2xf32> to vector<8x1xf32>
    %35 = vector.broadcast %34 : vector<8x1xf32> to vector<8x32xf32>
    %36 = arith.mulf %35, %16 : vector<8x32xf32>
    %cst_17 = arith.constant 1.000000e+00 : f32
    %37 = vector.broadcast %cst_17 : f32 to vector<8x1xf32>
    %38 = arith.subf %37, %34 : vector<8x1xf32>
    %39 = vector.broadcast %38 : vector<8x1xf32> to vector<8x32xf32>
    %40 = arith.mulf %39, %17 : vector<8x32xf32>
    %41 = arith.addf %36, %40 : vector<8x32xf32>
    %c0_18 = arith.constant 0 : index
    %c32 = arith.constant 32 : index
    %42 = vector.load %arg6[%c0_18, %c32] : memref<8x64xf32, #tpu.memory_space<vmem>>, vector<8x32xf32>
    tpu.vector_store %arg6[%c0_18, %c32], %41 {strides = array<i32>} : memref<8x64xf32, #tpu.memory_space<vmem>>, vector<8x32xf32>,
    return
  }
  func.func @transform_0(%arg0: i32) -> (i32, i32) {
    %c0_i32 = arith.constant 0 : i32
    %c0_i32_0 = arith.constant 0 : i32
    return %arg0, %c0_i32 : i32, i32
  }
  func.func @transform_1(%arg0: i32) -> (i32, i32) {
    %c0_i32 = arith.constant 0 : i32
    %c0_i32_0 = arith.constant 0 : i32
    %c0_i32_1 = arith.constant 0 : i32
    return %c0_i32, %c0_i32_0 : i32, i32
  }
  func.func @transform_2(%arg0: i32) -> (i32, i32) {
    %c0_i32 = arith.constant 0 : i32
    %c0_i32_0 = arith.constant 0 : i32
    %c0_i32_1 = arith.constant 0 : i32
    return %c0_i32, %c0_i32_0 : i32, i32
  }
  func.func @transform_3(%arg0: i32) -> (i32, i32) {
    %c0_i32 = arith.constant 0 : i32
    %c0_i32_0 = arith.constant 0 : i32
    %c0_i32_1 = arith.constant 0 : i32
    return %c0_i32, %c0_i32_0 : i32, i32
  }
  func.func @transform_4(%arg0: i32) -> (i32, i32) {
    %c0_i32 = arith.constant 0 : i32
    %c0_i32_0 = arith.constant 0 : i32
    %c0_i32_1 = arith.constant 0 : i32
    return %c0_i32, %c0_i32_0 : i32, i32
  }
  func.func @transform_5(%arg0: i32) -> (i32, i32) {
    %c0_i32 = arith.constant 0 : i32
    %c0_i32_0 = arith.constant 0 : i32
    return %arg0, %c0_i32 : i32, i32
  }
}

</mosaic_0001>

<llo_original>
// kernel: tpu_custom_call.1
$region0: #{tpu_custom_call.1}
  #allocation0 [shape = 'u32[]', space=smem, size = 0x4, offset = 0x4, fixed_abs, tag = 'smem constant byte address 0x4 - core index']
  #allocation1 [shape = 'u32[72,128]{1,0:T(1,128)}', space=vmem, size = 0x9000, scoped, tag = 'internal scratch']
  %s0 = inlined_call_operand.hbm [shape: f32[8,32], index: 0, kind: input, shape index: {}]
  %s1 = inlined_call_operand.hbm [shape: f32[32,192], index: 1, kind: input, shape index: {}]
  %s2 = inlined_call_operand.hbm [shape: f32[1,192], index: 2, kind: input, shape index: {}]
  %s3 = inlined_call_operand.hbm [shape: f32[192,128], index: 3, kind: input, shape index: {}]
  %s4 = inlined_call_operand.vmem [shape: f32[1,128], index: 4, kind: input, shape index: {}]
  %s5 = inlined_call_operand.hbm [shape: f32[8,64], index: 5, kind: output, shape index: {}]
  %s6 = sld [smem:[#allocation0]]
  $region46: #{tpu_custom_call.1} parent=0
    _
  %s8 = ssub.s32 1, %s6
  %s9 = scalar_select 0, %s8, %s6
  $region1: #{tpu_custom_call.1} parent=0
    #allocation2 [shape = 'u8[4096]{0}', space=vmem, size = 0x1000, scoped, tag = 'input window, operand 0, single buffered']
    #allocation3 [shape = 's32[1]{0}', space=sflag, size = 0x4, scoped, tag = 'scoped memory for tpu_custom_call.1']
    #allocation4 [shape = 's32[1]{0}', space=sflag, size = 0x4, scoped, tag = 'scoped memory for tpu_custom_call.1']
    #allocation5 [shape = 'u8[32768]{0}', space=vmem, size = 0x8000, scoped, tag = 'input window, operand 1, single buffered']
    #allocation6 [shape = 's32[1]{0}', space=sflag, size = 0x4, scoped, tag = 'scoped memory for tpu_custom_call.1']
    #allocation7 [shape = 'u8[1024]{0}', space=vmem, size = 0x400, scoped, tag = 'input window, operand 2, single buffered']
    #allocation8 [shape = 'u8[98304]{0}', space=vmem, size = 0x18000, scoped, tag = 'input window, operand 3, single buffered']
    #allocation9 [shape = 's32[1]{0}', space=sflag, size = 0x4, scoped, tag = 'scoped memory for tpu_custom_call.1']
    #allocation10 [shape = 'u8[4096]{0}', space=vmem, size = 0x1000, scoped, tag = 'output window, operand 0, single buffered']
    %10 = vsyncpa [#allocation3], 0
    %11 = vsyncpa [#allocation6], 0
    %12 = vsyncpa [#allocation9], 0
    %13 = vsyncpa [#allocation4], 0
    // Predicated region
    $region2: #{tpu_custom_call.1} parent=1 // pred_check
      _
    $region3: #{tpu_custom_call.1} parent=1 // pred_check_branch
      %15 = sbr.rel (0) target = $region5
    $region4: #{tpu_custom_call.1} parent=1 // pred_region
      %17 = vsyncadd [#allocation3], 0
      %s19 = sshll.u32 %s0, 4
      %s20 = int_to_ptr.hbm [resolvable:$true] %s19
      %s21 = sshll.u32 [#allocation2], 4
      %s22 = int_to_ptr.vmem [resolvable:$true] %s21
      %24 = dma.hbm_to_vmem [thread:$0]  %s20, 128, %s22, [#allocation3]
    $region5: #{tpu_custom_call.1} parent=1 // pred_fallthru
      _
    // Predicated region
    $region6: #{tpu_custom_call.1} parent=1 // pred_check
      _
    $region7: #{tpu_custom_call.1} parent=1 // pred_check_branch
      %26 = sbr.rel (0) target = $region9
    $region8: #{tpu_custom_call.1} parent=1 // pred_region
      %28 = vsyncadd [#allocation6], 0
      %s29 = sshll.u32 %s1, 4
      %s30 = int_to_ptr.hbm [resolvable:$true] %s29
      %s31 = sshll.u32 [#allocation5], 4
      %s32 = int_to_ptr.vmem [resolvable:$true] %s31
      %37 = dma.hbm_to_vmem [thread:$0]  %s30, 1024, %s32, [#allocation6], 256, 256, 16
    $region9: #{tpu_custom_call.1} parent=1 // pred_fallthru
      _
    // Predicated region
    $region10: #{tpu_custom_call.1} parent=1 // pred_check
      _
    $region11: #{tpu_custom_call.1} parent=1 // pred_check_branch
      %39 = sbr.rel (0) target = $region13
    $region12: #{tpu_custom_call.1} parent=1 // pred_region
      %41 = vsyncadd [#allocation6], 0
      %s43 = sshll.u32 %s2, 4
      %s44 = int_to_ptr.hbm [resolvable:$true] %s43
      %s45 = sshll.u32 [#allocation7], 4
      %s46 = int_to_ptr.vmem [resolvable:$true] %s45
      %48 = dma.hbm_to_vmem [thread:$0]  %s44, 32, %s46, [#allocation6]
    $region13: #{tpu_custom_call.1} parent=1 // pred_fallthru
      _
    // Predicated region
    $region14: #{tpu_custom_call.1} parent=1 // pred_check
      _
    $region15: #{tpu_custom_call.1} parent=1 // pred_check_branch
      %50 = sbr.rel (0) target = $region17
    $region16: #{tpu_custom_call.1} parent=1 // pred_region
      %52 = vsyncadd [#allocation9], 0
      %s53 = sshll.u32 %s3, 4
      %s54 = int_to_ptr.hbm [resolvable:$true] %s53
      %s55 = sshll.u32 [#allocation8], 4
      %s56 = int_to_ptr.vmem [resolvable:$true] %s55
      %61 = dma.hbm_to_vmem [thread:$0]  %s54, 3072, %s56, [#allocation9], 128, 128, 8
    $region17: #{tpu_custom_call.1} parent=1 // pred_fallthru
      _
    // Predicated region
    $region18: #{tpu_custom_call.1} parent=1 // pred_check
      _
    $region19: #{tpu_custom_call.1} parent=1 // pred_check_branch
      %63 = sbr.rel (0) target = $region21
    $region20: #{tpu_custom_call.1} parent=1 // pred_region
      _
    $region21: #{tpu_custom_call.1} parent=1 // pred_fallthru
      _
    // Predicated region
    $region22: #{tpu_custom_call.1} parent=1 // pred_check
      _
    $region23: #{tpu_custom_call.1} parent=1 // pred_check_branch
      %65 = sbr.rel (0) target = $region25
    $region24: #{tpu_custom_call.1} parent=1 // pred_region
      %67 = dma.done [#allocation3], 128
    $region25: #{tpu_custom_call.1} parent=1 // pred_fallthru
      _
    // Predicated region
    $region26: #{tpu_custom_call.1} parent=1 // pred_check
      _
    $region27: #{tpu_custom_call.1} parent=1 // pred_check_branch
      %69 = sbr.rel (0) target = $region29
    $region28: #{tpu_custom_call.1} parent=1 // pred_region
      %71 = dma.done [#allocation6], 1024
    $region29: #{tpu_custom_call.1} parent=1 // pred_fallthru
      _
    // Predicated region
    $region30: #{tpu_custom_call.1} parent=1 // pred_check
      _
    $region31: #{tpu_custom_call.1} parent=1 // pred_check_branch
      %73 = sbr.rel (0) target = $region33
    $region32: #{tpu_custom_call.1} parent=1 // pred_region
      %75 = dma.done [#allocation6], 32
    $region33: #{tpu_custom_call.1} parent=1 // pred_fallthru
      _
    // Predicated region
    $region34: #{tpu_custom_call.1} parent=1 // pred_check
      _
    $region35: #{tpu_custom_call.1} parent=1 // pred_check_branch
      %77 = sbr.rel (0) target = $region37
    $region36: #{tpu_custom_call.1} parent=1 // pred_region
      %79 = dma.done [#allocation9], 3072
    $region37: #{tpu_custom_call.1} parent=1 // pred_fallthru
      _
    %v80 = vld [vmem:[#allocation5] sm:$0xff]
    %v81 = vld [vmem:[#allocation5 + $0x8] sm:$0xff]
    %v82 = vld [vmem:[#allocation5 + $0x10] sm:$0xff]
    %v83 = vld [vmem:[#allocation5 + $0x18] sm:$0xff]
    %v84 = vld [vmem:[#allocation5 + $0x20] sm:$0xff]
    %v85 = vld [vmem:[#allocation5 + $0x28] sm:$0xff]
    %v86 = vld [vmem:[#allocation5 + $0x30] sm:$0xff]
    %v87 = vld [vmem:[#allocation5 + $0x38] sm:$0xff]
    %v88 = vld [vmem:[#allocation7] sm:$0x3]
    %v89 = vld [vmem:[#allocation8] sm:$0xff]
    %v90 = vld [vmem:[#allocation8 + $0x8] sm:$0xff]
    %v91 = vld [vmem:[#allocation8 + $0x10] sm:$0xff]
    %v92 = vld [vmem:[#allocation8 + $0x18] sm:$0xff]
    %v93 = vld [vmem:[#allocation8 + $0x20] sm:$0xff]
    %v94 = vld [vmem:[#allocation8 + $0x28] sm:$0xff]
    %v95 = vld [vmem:[#allocation8 + $0x30] sm:$0xff]
    %v96 = vld [vmem:[#allocation8 + $0x38] sm:$0xff]
    %v97 = vld [vmem:[#allocation8 + $0x40] sm:$0xff]
    %v98 = vld [vmem:[#allocation8 + $0x48] sm:$0xff]
    %v99 = vld [vmem:[#allocation8 + $0x50] sm:$0xff]
    %v100 = vld [vmem:[#allocation8 + $0x58] sm:$0xff]
    %v101 = vld [vmem:[#allocation8 + $0x60] sm:$0xff]
    %v102 = vld [vmem:[#allocation8 + $0x68] sm:$0xff]
    %v103 = vld [vmem:[#allocation8 + $0x70] sm:$0xff]
    %v104 = vld [vmem:[#allocation8 + $0x78] sm:$0xff]
    %v105 = vld [vmem:[#allocation8 + $0x80] sm:$0xff]
    %v106 = vld [vmem:[#allocation8 + $0x88] sm:$0xff]
    %v107 = vld [vmem:[#allocation8 + $0x90] sm:$0xff]
    %v108 = vld [vmem:[#allocation8 + $0x98] sm:$0xff]
    %v109 = vld [vmem:[#allocation8 + $0xa0] sm:$0xff]
    %v110 = vld [vmem:[#allocation8 + $0xa8] sm:$0xff]
    %v111 = vld [vmem:[#allocation8 + $0xb0] sm:$0xff]
    %v112 = vld [vmem:[#allocation8 + $0xb8] sm:$0xff]
    %v113 = vld [vmem:[%s4] sm:$0x1]
    %v114 = vld [vmem:[#allocation2] sm:$0xff]
    %v116 = vperm.slane %v88, 0
    %v117 = vperm.slane %v88, 1
    %vm120 = vcmask 261120
    %v122 = vsel %vm120, %v114, 0
    %124 = vmatpush.msra.mxu0 0.0
    %125 = vmatpush.msra.mxu0 0.0
    %126 = vmatpush.msra.mxu0 0.0
    %127 = vmatpush.msra.mxu0 0.0
    %128 = vmatpush.msra.mxu0 0.0
    %129 = vmatpush.msra.mxu0 0.0
    %130 = vmatpush.msra.mxu0 0.0
    %131 = vmatpush.msra.mxu0 0.0
    %132 = vmatpush.msra.mxu0 0.0
    %133 = vmatpush.msra.mxu0 0.0
    %134 = vmatpush.msra.mxu0 0.0
    %135 = vmatpush.msra.mxu0 0.0
    %136 = vmatpush.msra.mxu0 %v86
    %137 = vmatpush.msra.mxu0 %v84
    %138 = vmatpush.msra.mxu0 %v82
    %139 = vmatpush.msra.mxu0 %v80
    %140 = vmatmul.f32.gmra.mxu0 %v122
    %v141 = vpop.f32.mrf.mxu0
    %v142 = vadd.f32 %v116, %v141
    %143 = vdwg.mxu0
    %144 = vmatpush.msra.mxu0 0.0
    %145 = vmatpush.msra.mxu0 0.0
    %146 = vmatpush.msra.mxu0 0.0
    %147 = vmatpush.msra.mxu0 0.0
    %148 = vmatpush.msra.mxu0 0.0
    %149 = vmatpush.msra.mxu0 0.0
    %150 = vmatpush.msra.mxu0 0.0
    %151 = vmatpush.msra.mxu0 0.0
    %152 = vmatpush.msra.mxu0 0.0
    %153 = vmatpush.msra.mxu0 0.0
    %154 = vmatpush.msra.mxu0 0.0
    %155 = vmatpush.msra.mxu0 0.0
    %156 = vmatpush.msra.mxu0 %v87
    %157 = vmatpush.msra.mxu0 %v85
    %158 = vmatpush.msra.mxu0 %v83
    %159 = vmatpush.msra.mxu0 %v81
    %160 = vmatmul.f32.gmra.mxu0 %v122
    %v161 = vpop.f32.mrf.mxu0
    %v162 = vadd.f32 %v117, %v161
    %163 = vdwg.mxu0
    %v164 = vmax.f32 %v142, 0.0
    %v165 = vmax.f32 %v162, 0.0
    %v167 = vperm.slane %v113, 0
    %vm169 = vcmask 523264
    %v171 = vsel %vm169, %v165, 0
    %173 = vmatpush.msra.mxu0 %v104
    %174 = vmatpush.msra.mxu0 %v103
    %175 = vmatpush.msra.mxu0 %v102
    %176 = vmatpush.msra.mxu0 %v101
    %177 = vmatpush.msra.mxu0 %v100
    %178 = vmatpush.msra.mxu0 %v99
    %179 = vmatpush.msra.mxu0 %v98
    %180 = vmatpush.msra.mxu0 %v97
    %181 = vmatpush.msra.mxu0 %v96
    %182 = vmatpush.msra.mxu0 %v95
    %183 = vmatpush.msra.mxu0 %v94
    %184 = vmatpush.msra.mxu0 %v93
    %185 = vmatpush.msra.mxu0 %v92
    %186 = vmatpush.msra.mxu0 %v91
    %187 = vmatpush.msra.mxu0 %v90
    %188 = vmatpush.msra.mxu0 %v89
    %189 = vmatmul.f32.gmra.mxu0 %v164
    %v190 = vpop.f32.mrf.mxu0
    %v191 = vadd.f32 %v167, %v190
    %192 = vdwg.mxu0
    %193 = vmatpush.msra.mxu0 0.0
    %194 = vmatpush.msra.mxu0 0.0
    %195 = vmatpush.msra.mxu0 0.0
    %196 = vmatpush.msra.mxu0 0.0
    %197 = vmatpush.msra.mxu0 0.0
    %198 = vmatpush.msra.mxu0 0.0
    %199 = vmatpush.msra.mxu0 0.0
    %200 = vmatpush.msra.mxu0 0.0
    %201 = vmatpush.msra.mxu0 %v112
    %202 = vmatpush.msra.mxu0 %v111
    %203 = vmatpush.msra.mxu0 %v110
    %204 = vmatpush.msra.mxu0 %v109
    %205 = vmatpush.msra.mxu0 %v108
    %206 = vmatpush.msra.mxu0 %v107
    %207 = vmatpush.msra.mxu0 %v106
    %208 = vmatpush.msra.mxu0 %v105
    %209 = vmatmul.f32.gmra.mxu0 %v171
    %v210 = vpop.f32.mrf.mxu0
    %v211 = vadd.f32 %v191, %v210
    %212 = vdwg.mxu0
    %v213 = vmax.f32 %v211, 0.0
    %v214 = vsub.f32 0.0, %v211
    %v215 = vmul.f32 %v214, 1.442695
    %v216 = vpow.pop %v215
    %v217 = vadd.f32 %v216, 1.0
    %v218 = vrcp.pop %v217
    %220 = vset.pattern.permute.xlu0 64
    %221 = vperm.xlu0 %220, %v218
    %v222 = vpop.permute.xlu0 %221
    %v224 = vmul.f32 %v222, %v213
    %v225 = vsub.f32 1.0, %v218
    %227 = vset.pattern.permute.xlu0 64
    %228 = vperm.xlu0 %227, %v225
    %v229 = vpop.permute.xlu0 %228
    %v231 = vmul.f32 %v229, %v213
    %233 = vrot.lane.b32.xlu0 %v231, 96
    %v234 = vpop.permute.xlu0 %233
    %v236 = vadd.f32 %v224, %v234
    %237 = vst.msk [vmem:[#allocation10] sm:$0xff] %vm120, %v236
    %238 = vset.pattern.permute.xlu0 65
    %239 = vperm.xlu0 %238, %v218
    %v240 = vpop.permute.xlu0 %239
    %v242 = vmul.f32 %v240, %v213
    %243 = vset.pattern.permute.xlu0 65
    %244 = vperm.xlu0 %243, %v225
    %v245 = vpop.permute.xlu0 %244
    %v247 = vmul.f32 %v245, %v213
    %249 = vrot.lane.b32.xlu0 %v247, 96
    %v250 = vpop.permute.xlu0 %249
    %v252 = vadd.f32 %v242, %v250
    %254 = vrot.lane.b32.xlu0 %v252, 32
    %v255 = vpop.permute.xlu0 %254
    %vm257 = vcmask 523520
    %258 = vst.msk [vmem:[#allocation10] sm:$0xff] %vm257, %v255
    // Predicated region
    $region38: #{tpu_custom_call.1} parent=1 // pred_check
      _
    $region39: #{tpu_custom_call.1} parent=1 // pred_check_branch
      %260 = sbr.rel (0) target = $region41
    $region40: #{tpu_custom_call.1} parent=1 // pred_region
      %262 = vsyncadd [#allocation4], 0
      %s264 = sshll.u32 [#allocation10], 4
      %s265 = int_to_ptr.vmem [resolvable:$true] %s264
      %s266 = sshll.u32 %s5, 4
      %s267 = int_to_ptr.hbm [resolvable:$true] %s266
      %269 = dma.vmem_to_hbm [thread:$0]  %s265, 128, %s267, [#allocation4]
    $region41: #{tpu_custom_call.1} parent=1 // pred_fallthru
      _
    // Predicated region
    $region42: #{tpu_custom_call.1} parent=1 // pred_check
      _
    $region43: #{tpu_custom_call.1} parent=1 // pred_check_branch
      %271 = sbr.rel (0) target = $region45
    $region44: #{tpu_custom_call.1} parent=1 // pred_region
      %273 = dma.done [#allocation4], 128
    $region45: #{tpu_custom_call.1} parent=1 // pred_fallthru
      _
    %274 = vsyncpa [#allocation3], 1
    %275 = vsyncpa [#allocation6], 1
    %276 = vsyncpa [#allocation9], 1
    %277 = vsyncpa [#allocation4], 1

</llo_original>
